<compile_context>
chip_gen: v6e
topology: v6e:2x2x1
jax: 0.10.0
libtpu: 0.0.40
codegen_flags: <defaults>
</compile_context>

<pallas_src>
import functools
import math

import jax
import jax.numpy as jnp
from jax.experimental import pallas as pl
from jax.experimental.pallas import tpu as pltpu


# --------------------------------------------------------------------------
# helpers
# --------------------------------------------------------------------------
def _round_up(x, m):
    return ((x + m - 1) // m) * m


def _tile_and_pad(dim, target, align):
    """Pick a tile for `dim` (<= target) and the padded extent it must divide.

    `target` must be a multiple of `align`.  When dim <= target the full
    extent is used (always a legal block).  Otherwise prefer an evenly
    dividing tile that is a multiple of `align`; fall back to zero padding.
    """
    if dim <= target:
        return dim, dim
    for t in range(target, align - 1, -align):
        if dim % t == 0:
            return t, dim
    return target, _round_up(dim, target)


def _divisor_seq_tile(S, target):
    """Largest tile <= target that divides S and is a multiple of 8 (or S)."""
    if S <= target:
        return S
    t0 = min(target, S)
    t0 -= t0 % 8
    for t in range(t0, 7, -8):
        if S % t == 0:
            return t
    return None


def _seq_tiling(S, tq_target, tkv_target):
    """Q/KV sequence tiles; pad S to a 128 multiple if no divisor tile exists."""
    tq = _divisor_seq_tile(S, tq_target)
    tkv = _divisor_seq_tile(S, tkv_target)
    if tq is not None and tkv is not None:
        return tq, tkv, S
    t = 128
    return t, t, _round_up(S, t)


# --------------------------------------------------------------------------
# Kernel 1: tiled linear projection  (x @ W + b)
#   bf16 MXU operands, f32 accumulation, bias folded into the accumulator init.
# --------------------------------------------------------------------------
def _linear_kernel_single(x_ref, w_ref, b_ref, o_ref):
    lhs = x_ref[...].astype(w_ref.dtype)            # bf16 MXU operands
    acc = jnp.dot(lhs, w_ref[...], preferred_element_type=jnp.float32)
    o_ref[...] = (acc + b_ref[...]).astype(o_ref.dtype)


def _linear_kernel_acc(x_ref, w_ref, b_ref, o_ref, acc_ref):
    @pl.when(pl.program_id(2) == 0)
    def _():                                        # init accumulator with the bias
        acc_ref[...] = jnp.broadcast_to(b_ref[...], acc_ref.shape).astype(jnp.float32)

    lhs = x_ref[...].astype(w_ref.dtype)
    acc_ref[...] += jnp.dot(lhs, w_ref[...], preferred_element_type=jnp.float32)

    @pl.when(pl.program_id(2) == pl.num_programs(2) - 1)
    def _():
        o_ref[...] = acc_ref[...].astype(o_ref.dtype)


def prepare_linear(w, b, *, compute_dtype=jnp.bfloat16,
                   tn_target=512, tk_target=512):
    """One-time weight prep: tile-align (pad) K/N, cast to the MXU dtype."""
    K, N = w.shape
    assert b.shape == (N,)
    tk, Kp = _tile_and_pad(K, tk_target, 128)
    tn, Np = _tile_and_pad(N, tn_target, 128)
    if (Kp, Np) != (K, N):
        w = jnp.pad(w, ((0, Kp - K), (0, Np - N)))
    if Np != N:
        b = jnp.pad(b, (0, Np - N))
    return dict(w=w.astype(compute_dtype),
                b=b.astype(jnp.float32).reshape(1, Np),
                k_in=K, n_out=N, tk=tk, tn=tn)


def pallas_linear(x, params, *, out_dtype, tm_target=256):
    """x: (M, K) @ prepared weights -> (M, n_out) in out_dtype."""
    w, b = params["w"], params["b"]
    K, N = params["k_in"], params["n_out"]
    tk, tn = params["tk"], params["tn"]
    Kp, Np = w.shape
    M = x.shape[0]
    assert x.shape[1] == K
    tm, Mp = _tile_and_pad(M, tm_target, 8)
    if (Mp, Kp) != (M, K):
        x = jnp.pad(x, ((0, Mp - M), (0, Kp - K)))

    nk = Kp // tk
    kernel = _linear_kernel_single if nk == 1 else _linear_kernel_acc
    scratch = [] if nk == 1 else [pltpu.VMEM((tm, tn), jnp.float32)]

    out = pl.pallas_call(
        kernel,
        out_shape=jax.ShapeDtypeStruct((Mp, Np), out_dtype),
        grid_spec=pltpu.PrefetchScalarGridSpec(
            num_scalar_prefetch=0,
            grid=(Mp // tm, Np // tn, nk),
            in_specs=[
                pl.BlockSpec((tm, tk), lambda i, j, k: (i, k)),
                pl.BlockSpec((tk, tn), lambda i, j, k: (k, j)),
                pl.BlockSpec((1, tn), lambda i, j, k: (0, j)),
            ],
            out_specs=pl.BlockSpec((tm, tn), lambda i, j, k: (i, j)),
            scratch_shapes=scratch,
        ),
        compiler_params=pltpu.CompilerParams(
            dimension_semantics=("parallel", "parallel", "arbitrary")),
    )(x, w, b)

    if (Mp, Np) != (M, N):
        out = out[:M, :N]
    return out


# --------------------------------------------------------------------------
# Kernel 2a: flash-style attention, values only (default path)
#   q:  (B, S, D)   compact, head-major, 1/sqrt(dk) already folded in, bf16
#   kv: (B, S, 2D)  compact, [K heads | V heads], bf16
# --------------------------------------------------------------------------
def _mha_flash_kernel(q_ref, kv_ref, o_ref, m_sc, l_sc, acc_sc,
                      *, num_heads, dk, d_model, s_valid):
    j = pl.program_id(2)
    tkv = kv_ref.shape[1]

    @pl.when(j == 0)
    def _():
        m_sc[...] = jnp.full(m_sc.shape, -jnp.inf, dtype=m_sc.dtype)
        l_sc[...] = jnp.zeros(l_sc.shape, dtype=l_sc.dtype)
        acc_sc[...] = jnp.zeros(acc_sc.shape, dtype=acc_sc.dtype)

    for h in range(num_heads):
        lo = h * dk
        qh = q_ref[0, :, lo:lo + dk]                         # (tq, dk)  bf16
        kh = kv_ref[0, :, lo:lo + dk]                        # (tkv, dk) bf16
        vh = kv_ref[0, :, d_model + lo:d_model + lo + dk]    # (tkv, dk) bf16

        s = jax.lax.dot_general(qh, kh, (((1,), (1,)), ((), ())),
                                preferred_element_type=jnp.float32)   # (tq, tkv)
        if s_valid is not None:   # only traced when S was padded
            col = jax.lax.broadcasted_iota(jnp.int32, s.shape, 1) + j * tkv
            s = jnp.where(col < s_valid, s, -1e30)

        m_prev = m_sc[h]                                     # (tq, 1)
        m_new = jnp.maximum(m_prev, jnp.max(s, axis=-1, keepdims=True))
        alpha = jnp.exp(m_prev - m_new)
        p = jnp.exp(s - m_new)
        l_sc[h] = alpha * l_sc[h] + jnp.sum(p, axis=-1, keepdims=True)
        acc_sc[h] = alpha * acc_sc[h] + jnp.dot(
            p.astype(vh.dtype), vh, preferred_element_type=jnp.float32)
        m_sc[h] = m_new

    @pl.when(j == pl.num_programs(2) - 1)
    def _():
        outs = []
        for h in range(num_heads):
            inv_l = pl.reciprocal(l_sc[h], approx=True)      # EUP slot
            outs.append(acc_sc[h] * inv_l)
        # single lane-contiguous store of the whole (tq, D) block
        o_ref[0] = jnp.concatenate(outs, axis=-1).astype(o_ref.dtype)


def pallas_mha_flash(q, kv, *, num_heads, dk, tq_target=256, tkv_target=256):
    B, S, D = q.shape
    assert kv.shape == (B, S, 2 * D) and D == num_heads * dk
    tq, tkv, Sp = _seq_tiling(S, tq_target, tkv_target)
    if Sp != S:
        q = jnp.pad(q, ((0, 0), (0, Sp - S), (0, 0)))
        kv = jnp.pad(kv, ((0, 0), (0, Sp - S), (0, 0)))
    kernel = functools.partial(_mha_flash_kernel, num_heads=num_heads, dk=dk,
                               d_model=D, s_valid=(S if Sp != S else None))
    out = pl.pallas_call(
        kernel,
        out_shape=jax.ShapeDtypeStruct((B, Sp, D), q.dtype),
        grid_spec=pltpu.PrefetchScalarGridSpec(
            num_scalar_prefetch=0,
            grid=(B, Sp // tq, Sp // tkv),
            in_specs=[
                pl.BlockSpec((1, tq, D), lambda b, i, j: (b, i, 0)),       # Q tile
                pl.BlockSpec((1, tkv, 2 * D), lambda b, i, j: (b, j, 0)),  # K|V tile
            ],
            out_specs=pl.BlockSpec((1, tq, D), lambda b, i, j: (b, i, 0)),
            scratch_shapes=[
                pltpu.VMEM((num_heads, tq, 1), jnp.float32),   # running max
                pltpu.VMEM((num_heads, tq, 1), jnp.float32),   # running sum
                pltpu.VMEM((num_heads, tq, dk), jnp.float32),  # accumulator
            ],
        ),
        compiler_params=pltpu.CompilerParams(
            dimension_semantics=("parallel", "parallel", "arbitrary")),
    )(q, kv)
    if Sp != S:
        out = out[:, :S, :]
    return out


# --------------------------------------------------------------------------
# Kernel 2b: attention with probabilities (only when return_attention=True)
#   tiled over (B, S/tq); exact divide; probability block budgeted for VMEM.
# --------------------------------------------------------------------------
def _mha_full_kernel(q_ref, kv_ref, o_ref, a_ref, *, num_heads, dk, d_model):
    vals = []
    for h in range(num_heads):
        lo = h * dk
        qh = q_ref[0, :, lo:lo + dk]
        kh = kv_ref[0, :, lo:lo + dk]
        vh = kv_ref[0, :, d_model + lo:d_model + lo + dk]
        s = jax.lax.dot_general(qh, kh, (((1,), (1,)), ((), ())),
                                preferred_element_type=jnp.float32)   # (tq, S)
        m = jnp.max(s, axis=-1, keepdims=True)
        e = jnp.exp(s - m)
        attn = e / jnp.sum(e, axis=-1, keepdims=True)   # exact divide (inspection path)
        a_ref[0, h] = attn
        vals.append(jnp.dot(attn.astype(vh.dtype), vh,
                            preferred_element_type=jnp.float32))
    o_ref[0] = jnp.concatenate(vals, axis=-1).astype(o_ref.dtype)


def _attn_probs_qtile(S, num_heads, budget_bytes):
    cands = [t for t in range(8, S + 1, 8) if S % t == 0] or [S]
    ok = [t for t in cands if num_heads * t * S * 4 <= budget_bytes]
    return max(ok) if ok else min(cands)


def pallas_mha_full(q, kv, *, num_heads, dk, vmem_probs_budget=4 << 20):
    B, S, D = q.shape
    assert kv.shape == (B, S, 2 * D) and D == num_heads * dk
    tq = _attn_probs_qtile(S, num_heads, vmem_probs_budget)
    kernel = functools.partial(_mha_full_kernel,
                               num_heads=num_heads, dk=dk, d_model=D)
    return pl.pallas_call(
        kernel,
        out_shape=(jax.ShapeDtypeStruct((B, S, D), q.dtype),
                   jax.ShapeDtypeStruct((B, num_heads, S, S), jnp.float32)),
        grid_spec=pltpu.PrefetchScalarGridSpec(
            num_scalar_prefetch=0,
            grid=(B, S // tq),
            in_specs=[
                pl.BlockSpec((1, tq, D), lambda b, i: (b, i, 0)),
                pl.BlockSpec((1, S, 2 * D), lambda b, i: (b, 0, 0)),  # full K|V slab
            ],
            out_specs=[
                pl.BlockSpec((1, tq, D), lambda b, i: (b, i, 0)),
                pl.BlockSpec((1, num_heads, tq, S), lambda b, i: (b, 0, i, 0)),
            ],
        ),
        compiler_params=pltpu.CompilerParams(
            dimension_semantics=("parallel", "parallel")),
    )(q, kv)


# --------------------------------------------------------------------------
# Module: SO2MultiheadAttention
# --------------------------------------------------------------------------
class SO2MultiheadAttentionPallas:
    def __init__(self, L, embed_dim, num_heads, key, compute_dtype=jnp.bfloat16):
        assert embed_dim % num_heads == 0
        self.L = L
        self.embed_dim = embed_dim
        self.num_heads = num_heads
        self.head_dim = embed_dim // num_heads
        self.compute_dtype = compute_dtype
        # size of SO(2) band-limited regular representation with bandlimit L
        self.irreps_dim = 2 * L + 1
        self.in_size = embed_dim * self.irreps_dim        # D = in_type.size
        self.dk = self.irreps_dim * self.head_dim         # per-head feature size

        # TODO(synk): SO2MLP's equivariant weight structure (per-frequency
        # block-diagonal weights, bias only on trivial irreps) is not given in
        # the reference; the qkv/o projections are implemented as deterministic
        # dense linear layers with the same input/output sizes.
        D = self.in_size
        k1, k2, k3, k4 = jax.random.split(key, 4)
        w_scale = 1.0 / math.sqrt(D)
        # canonical qkv weight: column c = h*(3*dk) + t*dk + f  (PyTorch reshape order)
        self.w_qkv = jax.random.normal(k1, (D, 3 * D), jnp.float32) * w_scale
        self.b_qkv = jax.random.normal(k2, (3 * D,), jnp.float32) * 0.01
        self.w_o = jax.random.normal(k3, (D, D), jnp.float32) * w_scale
        self.b_o = jax.random.normal(k4, (D,), jnp.float32) * 0.01

        # ---- one-time layout plumbing (nothing permuted / padded per call) ----
        dk, H = self.dk, num_heads
        def idx(t):
            return jnp.array([h * 3 * dk + t * dk + f
                              for h in range(H) for f in range(dk)], jnp.int32)
        attn_scale = 1.0 / math.sqrt(dk)
        # Q projection: compact head-major columns, 1/sqrt(dk) folded into W and b.
        w_q = self.w_qkv[:, idx(0)] * attn_scale
        b_q = self.b_qkv[idx(0)] * attn_scale
        # K|V projection: compact head-major columns, [K heads | V heads].
        w_kv = jnp.concatenate([self.w_qkv[:, idx(1)], self.w_qkv[:, idx(2)]], axis=1)
        b_kv = jnp.concatenate([self.b_qkv[idx(1)], self.b_qkv[idx(2)]])
        self.q_proj = prepare_linear(w_q, b_q, compute_dtype=compute_dtype)
        self.kv_proj = prepare_linear(w_kv, b_kv, compute_dtype=compute_dtype)
        # values leave the attention kernel already in the canonical head-major
        # layout, so w_o is used unchanged (cast + tile-aligned once here).
        self.o_proj = prepare_linear(self.w_o, self.b_o, compute_dtype=compute_dtype)

    def __call__(self, x, mask=None, return_attention=False):
        if mask is not None:
            # TODO(synk): mask branch of scaledDotProduct (masked_fill -9e15)
            # is not implemented; only the mask=None path is supported.
            raise NotImplementedError("mask is not supported")

        B, S, D = x.shape
        assert D == self.in_size
        x_flat = x.reshape(B * S, D)

        # Projections: bf16 MXU operands, f32 accumulate, bf16 intermediates.
        q = pallas_linear(x_flat, self.q_proj, out_dtype=self.compute_dtype)
        kv = pallas_linear(x_flat, self.kv_proj, out_dtype=self.compute_dtype)
        q = q.reshape(B, S, D)          # free reshape
        kv = kv.reshape(B, S, 2 * D)    # free reshape

        if return_attention:
            values, attention = pallas_mha_full(
                q, kv, num_heads=self.num_heads, dk=self.dk)
        else:
            values = pallas_mha_flash(
                q, kv, num_heads=self.num_heads, dk=self.dk)
            attention = None

        values = values.reshape(B * S, D)                   # free reshape

        # Output projection; returns (B*S, D) exactly like the PyTorch forward.
        o = pallas_linear(values, self.o_proj, out_dtype=jnp.float32)

        if return_attention:
            return o, attention
        return o


# --------------------------------------------------------------------------
# Pure-JAX reference (canonical weights, PyTorch recipe).  It mirrors the
# kernels' bf16-operand / f32-accumulate numerics so the tolerance stays tight.
# --------------------------------------------------------------------------
def reference_forward(mod, x):
    cd = mod.compute_dtype
    B, S, D = x.shape
    xf = x.reshape(B * S, D)
    qkv = jnp.dot(xf.astype(cd), mod.w_qkv.astype(cd),
                  preferred_element_type=jnp.float32) + mod.b_qkv
    qkv = qkv.reshape(B, S, mod.num_heads, 3 * mod.dk).astype(cd)
    qkv = jnp.transpose(qkv, (0, 2, 1, 3))
    q, k, v = jnp.split(qkv, 3, axis=-1)
    logits = jnp.einsum("bhqd,bhkd->bhqk", q, k,
                        preferred_element_type=jnp.float32) / math.sqrt(mod.dk)
    attn = jax.nn.softmax(logits, axis=-1)
    values = jnp.einsum("bhqk,bhkd->bhqd", attn.astype(cd), v,
                        preferred_element_type=jnp.float32)
    values = jnp.transpose(values, (0, 2, 1, 3)).reshape(B * S, D).astype(cd)
    o = jnp.dot(values, mod.w_o.astype(cd),
                preferred_element_type=jnp.float32) + mod.b_o
    return o, attn


if __name__ == "__main__":
    key = jax.random.PRNGKey(0)
    k_param, k_x = jax.random.split(key)

    L = 1            # bandlimit -> irreps_dim = 3
    embed_dim = 8
    num_heads = 2
    B, S = 2, 8

    mod = SO2MultiheadAttentionPallas(L, embed_dim, num_heads, k_param)
    x = jax.random.normal(k_x, (B, S, mod.in_size), jnp.float32)   # (2, 8, 24)

    # default path: flash-tiled, values-only attention
    o_flash = jax.block_until_ready(mod(x))
    # inspection path: also emits the (B, H, S, S) probabilities (exact softmax)
    o_full, attn = mod(x, return_attention=True)
    o_full = jax.block_until_ready(o_full)
    attn = jax.block_until_ready(attn)

    o_ref, attn_ref = reference_forward(mod, x)
    assert o_flash.shape == (B * S, mod.in_size)
    assert o_full.shape == (B * S, mod.in_size)
    assert attn.shape == (B, num_heads, S, S)
    # bf16 MXU operands + approx reciprocal -> few-e-3 absolute error budget
    assert jnp.allclose(o_flash, o_ref, rtol=3e-2, atol=3e-2), \
        float(jnp.max(jnp.abs(o_flash - o_ref)))
    assert jnp.allclose(o_full, o_ref, rtol=3e-2, atol=3e-2), \
        float(jnp.max(jnp.abs(o_full - o_ref)))
    assert jnp.allclose(attn, attn_ref, rtol=2e-2, atol=2e-2), \
        float(jnp.max(jnp.abs(attn - attn_ref)))

    print("KERNEL_OK")
</pallas_src>

<mosaic_0001>
module attributes {stable_mosaic.version = 11 : i64} {
  func.func @_linear_kernel_single(%arg0: i32, %arg1: i32, %arg2: i32, %arg3: memref<16x24xf32, #tpu.memory_space<vmem>>, %arg4: memref<24x24xbf16, #tpu.memory_space<vmem>>, %arg5: memref<1x24xf32, #tpu.memory_space<vmem>>, %arg6: memref<16x24xbf16, #tpu.memory_space<vmem>>) attributes {dimension_semantics = [#tpu.dimension_semantics<parallel>, #tpu.dimension_semantics<parallel>, #tpu.dimension_semantics<arbitrary>], iteration_bounds = array<i64: 1, 1, 1>, scalar_prefetch = 0 : i64, scratch_operands = 0 : i64, tpu.core_type = #tpu.core_type<tc>, window_params = [{transform_indices = @transform_0, window_bounds = array<i64: 16, 24>}, {transform_indices = @transform_1, window_bounds = array<i64: 24, 24>}, {transform_indices = @transform_2, window_bounds = array<i64: 1, 24>}, {transform_indices = @transform_3, window_bounds = array<i64: 16, 24>}]} {
    %c0 = arith.constant 0 : index
    %c0_0 = arith.constant 0 : index
    %0 = vector.load %arg3[%c0, %c0_0] : memref<16x24xf32, #tpu.memory_space<vmem>>, vector<16x24xf32>
    %1 = arith.truncf %0 : vector<16x24xf32> to vector<16x24xbf16>
    %c0_1 = arith.constant 0 : index
    %c0_2 = arith.constant 0 : index
    %2 = vector.load %arg4[%c0_1, %c0_2] : memref<24x24xbf16, #tpu.memory_space<vmem>>, vector<24x24xbf16>
    %cst = arith.constant dense<0.000000e+00> : vector<16x24xf32>
    %3 = tpu.matmul %1, %2, %cst {dimension_numbers = #tpu.dot_dimension_numbers<[1], [0], [0], [1], [0, 0, 1, 1], [], []>} : vector<16x24xbf16>, vector<24x24xbf16>, vector<16x24xf32> -> vector<16x24xf32>
    %c0_3 = arith.constant 0 : index
    %c0_4 = arith.constant 0 : index
    %4 = vector.load %arg5[%c0_3, %c0_4] : memref<1x24xf32, #tpu.memory_space<vmem>>, vector<1x24xf32>
    %5 = vector.broadcast %4 : vector<1x24xf32> to vector<16x24xf32>
    %6 = arith.addf %3, %5 : vector<16x24xf32>
    %7 = arith.truncf %6 : vector<16x24xf32> to vector<16x24xbf16>
    %c0_5 = arith.constant 0 : index
    %c0_6 = arith.constant 0 : index
    %8 = vector.load %arg6[%c0_5, %c0_6] : memref<16x24xbf16, #tpu.memory_space<vmem>>, vector<16x24xbf16>
    tpu.vector_store %arg6[%c0_5, %c0_6], %7 {strides = array<i32>} : memref<16x24xbf16, #tpu.memory_space<vmem>>, vector<16x24xbf16>,
    return
  }
  func.func @transform_0(%arg0: i32, %arg1: i32, %arg2: i32) -> (i32, i32) {
    %c0_i32 = arith.constant 0 : i32
    return %arg0, %arg2 : i32, i32
  }
  func.func @transform_1(%arg0: i32, %arg1: i32, %arg2: i32) -> (i32, i32) {
    %c0_i32 = arith.constant 0 : i32
    return %arg2, %arg1 : i32, i32
  }
  func.func @transform_2(%arg0: i32, %arg1: i32, %arg2: i32) -> (i32, i32) {
    %c0_i32 = arith.constant 0 : i32
    %c0_i32_0 = arith.constant 0 : i32
    return %c0_i32, %arg1 : i32, i32
  }
  func.func @transform_3(%arg0: i32, %arg1: i32, %arg2: i32) -> (i32, i32) {
    %c0_i32 = arith.constant 0 : i32
    return %arg0, %arg1 : i32, i32
  }
}

</mosaic_0001>

<llo_original>
// kernel: tpu_custom_call.1
$region0: #{tpu_custom_call.1}
  #allocation0 [shape = 'u32[]', space=smem, size = 0x4, offset = 0x4, fixed_abs, tag = 'smem constant byte address 0x4 - core index']
  #allocation1 [shape = 'u32[144,128]{1,0:T(1,128)}', space=vmem, size = 0x12000, scoped, tag = 'internal scratch']
  %s0 = inlined_call_operand.hbm [shape: f32[16,24], index: 0, kind: input, shape index: {}]
  %s1 = inlined_call_operand.hbm [shape: bf16[24,24], index: 1, kind: input, shape index: {}]
  %s2 = inlined_call_operand.vmem [shape: f32[1,24], index: 2, kind: input, shape index: {}]
  %s3 = inlined_call_operand.hbm [shape: bf16[16,24], index: 3, kind: output, shape index: {}]
  %s4 = sld [smem:[#allocation0]]
  $region30: #{tpu_custom_call.1} parent=0
    _
  %s6 = ssub.s32 1, %s4
  %s7 = scalar_select 0, %s6, %s4
  $region1: #{tpu_custom_call.1} parent=0
    #allocation2 [shape = 'u8[8192]{0}', space=vmem, size = 0x2000, scoped, tag = 'input window, operand 0, single buffered']
    #allocation3 [shape = 's32[1]{0}', space=sflag, size = 0x4, scoped, tag = 'scoped memory for tpu_custom_call.1']
    #allocation4 [shape = 's32[1]{0}', space=sflag, size = 0x4, scoped, tag = 'scoped memory for tpu_custom_call.1']
    #allocation5 [shape = 'u8[6144]{0}', space=vmem, size = 0x1800, scoped, tag = 'input window, operand 1, single buffered']
    #allocation6 [shape = 's32[1]{0}', space=sflag, size = 0x4, scoped, tag = 'scoped memory for tpu_custom_call.1']
    #allocation7 [shape = 'u8[4096]{0}', space=vmem, size = 0x1000, scoped, tag = 'output window, operand 0, single buffered']
    %8 = vsyncpa [#allocation3], 0
    %9 = vsyncpa [#allocation6], 0
    %10 = vsyncpa [#allocation4], 0
    // Predicated region
    $region2: #{tpu_custom_call.1} parent=1 // pred_check
      _
    $region3: #{tpu_custom_call.1} parent=1 // pred_check_branch
      %12 = sbr.rel (0) target = $region5
    $region4: #{tpu_custom_call.1} parent=1 // pred_region
      %s14 = ssub.s32 256, 256
      %15 = vsyncadd [#allocation3], %s14
      %s16 = sshll.u32 [#allocation2], 4
      %s17 = int_to_ptr.vmem [resolvable:$true] %s16
      %22 = dma.hbm_to_vmem [thread:$0]  %s0, 256, %s17, [#allocation3], 128, 128, 8
    $region5: #{tpu_custom_call.1} parent=1 // pred_fallthru
      _
    // Predicated region
    $region6: #{tpu_custom_call.1} parent=1 // pred_check
      _
    $region7: #{tpu_custom_call.1} parent=1 // pred_check_branch
      %24 = sbr.rel (0) target = $region9
    $region8: #{tpu_custom_call.1} parent=1 // pred_region
      %s26 = ssub.s32 192, 192
      %27 = vsyncadd [#allocation6], %s26
      %s28 = sshll.u32 [#allocation5], 4
      %s29 = int_to_ptr.vmem [resolvable:$true] %s28
      %34 = dma.hbm_to_vmem [thread:$0]  %s1, 192, %s29, [#allocation6], 64, 64, 4
    $region9: #{tpu_custom_call.1} parent=1 // pred_fallthru
      _
    // Predicated region
    $region10: #{tpu_custom_call.1} parent=1 // pred_check
      _
    $region11: #{tpu_custom_call.1} parent=1 // pred_check_branch
      %36 = sbr.rel (0) target = $region13
    $region12: #{tpu_custom_call.1} parent=1 // pred_region
      _
    $region13: #{tpu_custom_call.1} parent=1 // pred_fallthru
      _
    // Predicated region
    $region14: #{tpu_custom_call.1} parent=1 // pred_check
      _
    $region15: #{tpu_custom_call.1} parent=1 // pred_check_branch
      %38 = sbr.rel (0) target = $region17
    $region16: #{tpu_custom_call.1} parent=1 // pred_region
      %39 = dma.done [#allocation3], 256
    $region17: #{tpu_custom_call.1} parent=1 // pred_fallthru
      _
    // Predicated region
    $region18: #{tpu_custom_call.1} parent=1 // pred_check
      _
    $region19: #{tpu_custom_call.1} parent=1 // pred_check_branch
      %41 = sbr.rel (0) target = $region21
    $region20: #{tpu_custom_call.1} parent=1 // pred_region
      %42 = dma.done [#allocation6], 192
    $region21: #{tpu_custom_call.1} parent=1 // pred_fallthru
      _
    %v44 = vld [vmem:[#allocation2] sm:$0xff]
    %v45 = vld [vmem:[#allocation2 + $0x8] sm:$0xff]
    %v46 = vpack.c.bf16 %v45, %v44
    %v47 = vld [vmem:[#allocation5] sm:$0xf]
    %v48 = vld [vmem:[#allocation5 + $0x4] sm:$0xf]
    %v49 = vld [vmem:[#allocation5 + $0x8] sm:$0xf]
    %v50 = vld [vmem:[%s2] sm:$0x1]
    %v52 = vlaneseq
    %v53 = vshrl.u32 %v52, 7
    %v54 = vsub.s32 0, %v53
    %v55 = vrot.slane %v50, %v54
    %v60 = vunpack.c.l.b16 %v47
    %v61 = vunpack.c.l.b16 %v48
    %v62 = vunpack.c.l.b16 %v49
    %v63 = vpack.c.b16 %v61, %v60
    %v64 = vpack.c.b16 %v62, %v62
    %vm66 = vcmask 195584
    %v68 = vsel %vm66, %v46, 0
    %vm70 = vcmask 1043456
    %v72 = vsel %vm70, %v64, 0
    %74 = vmatprep.subr.bf16.mxu0 0
    %75 = vmatpush1.bf16.msra.mxu0 0
    %76 = vmatprep.subr.bf16.mxu0 0
    %77 = vmatpush1.bf16.msra.mxu0 0
    %78 = vmatprep.subr.bf16.mxu0 0
    %79 = vmatpush1.bf16.msra.mxu0 0
    %80 = vmatprep.subr.bf16.mxu0 0
    %81 = vmatpush1.bf16.msra.mxu0 0
    %82 = vmatprep.subr.bf16.mxu0 0
    %83 = vmatpush1.bf16.msra.mxu0 0
    %84 = vmatprep.subr.bf16.mxu0 0
    %85 = vmatpush1.bf16.msra.mxu0 0
    %86 = vmatprep.subr.bf16.mxu0 0
    %87 = vmatpush1.bf16.msra.mxu0 %v72
    %88 = vmatprep.subr.bf16.mxu0 0
    %89 = vmatpush1.bf16.msra.mxu0 %v63
    %90 = vmatprep.subr.bf16.mxu0 0
    %91 = vmatpush2.bf16.msra.mxu0 0
    %92 = vmatprep.subr.bf16.mxu0 0
    %93 = vmatpush2.bf16.msra.mxu0 0
    %94 = vmatprep.subr.bf16.mxu0 0
    %95 = vmatpush2.bf16.msra.mxu0 0
    %96 = vmatprep.subr.bf16.mxu0 0
    %97 = vmatpush2.bf16.msra.mxu0 0
    %98 = vmatprep.subr.bf16.mxu0 0
    %99 = vmatpush2.bf16.msra.mxu0 0
    %100 = vmatprep.subr.bf16.mxu0 0
    %101 = vmatpush2.bf16.msra.mxu0 0
    %102 = vmatprep.subr.bf16.mxu0 0
    %103 = vmatpush2.bf16.msra.mxu0 0
    %104 = vmatprep.subr.bf16.mxu0 0
    %105 = vmatpush2.bf16.msra.mxu0 0
    %106 = vmatprep.mubr.bf16.mxu0 0
    %107 = vmatmul.mubr.bf16.gmra.mxu0 %v68
    %v108 = vpop.f32.mrf.mxu0
    %v109 = vadd.f32 %v55, %v108
    %v110 = vpop.f32.mrf.mxu0
    %v111 = vpop.f32.mrf.mxu0
    %v112 = vadd.f32 %v55, %v111
    %v113 = vpop.f32.mrf.mxu0
    %114 = vdwg.mxu0
    %v115 = vpack.c.bf16 %v112, %v109
    %v117 = vunpack.c.l.b16 %v115
    %v118 = vunpack.c.h.b16 %v115
    %v119 = vpack.c.b16 %v117, %v117
    %v120 = vpack.c.b16 %v118, %v118
    %vm123 = vcmask 191488
    %124 = vst.msk [vmem:[#allocation7] sm:$0xf] %vm123, %v119
    %125 = vst.msk [vmem:[#allocation7 + $0x4] sm:$0xf] %vm123, %v120
    // Predicated region
    $region22: #{tpu_custom_call.1} parent=1 // pred_check
      _
    $region23: #{tpu_custom_call.1} parent=1 // pred_check_branch
      %127 = sbr.rel (0) target = $region25
    $region24: #{tpu_custom_call.1} parent=1 // pred_region
      %s129 = ssub.s32 128, 128
      %130 = vsyncadd [#allocation4], %s129
      %s131 = sshll.u32 [#allocation7], 4
      %s132 = int_to_ptr.vmem [resolvable:$true] %s131
      %137 = dma.vmem_to_hbm [thread:$0]  %s132, 128, %s3, [#allocation4], 64, 64, 4
    $region25: #{tpu_custom_call.1} parent=1 // pred_fallthru
      _
    // Predicated region
    $region26: #{tpu_custom_call.1} parent=1 // pred_check
      _
    $region27: #{tpu_custom_call.1} parent=1 // pred_check_branch
      %139 = sbr.rel (0) target = $region29
    $region28: #{tpu_custom_call.1} parent=1 // pred_region
      %140 = dma.done [#allocation4], 128
    $region29: #{tpu_custom_call.1} parent=1 // pred_fallthru
      _
    %141 = vsyncpa [#allocation3], 1
    %142 = vsyncpa [#allocation6], 1
    %143 = vsyncpa [#allocation4], 1

</llo_original>
